<compile_context>
chip_gen: v6e
topology: v6e:2x2x1
jax: 0.10.0
libtpu: 0.0.40
codegen_flags: <defaults>
</compile_context>

<pallas_src>
import functools

import jax
import jax.numpy as jnp
from jax.experimental import pallas as pl
from jax.experimental.pallas import tpu as pltpu


def _round_up(x, m):
    return (x + m - 1) // m * m


def _res_linear_kernel(x_ref, wt_ref, b_ref, o_ref):
    # x_ref:  (TM, D) f32 batch tile
    # wt_ref: (D, D)  bf16 weight, pre-transposed to [in_features, out_features]
    # b_ref:  (1, D)  f32 bias row
    # o_ref:  (TM, D) f32 output tile
    x = x_ref[...]                                      # f32, reused for residual
    # Clean A[M,K] x B[K,N] MXU orientation; bf16 operands, f32 accumulation.
    y = jnp.dot(
        x.astype(jnp.bfloat16),
        wt_ref[...],
        preferred_element_type=jnp.float32,
    )
    # Single fused f32 epilogue: residual + matmul + bias.
    o_ref[...] = (x + y + b_ref[...]).astype(o_ref.dtype)


def prepare_params(w, b):
    """One-time parameter prep (do NOT call per forward).

    w: [D, D] float32, PyTorch nn.Linear layout [out_features, in_features]
    b: [D]    float32
    Returns (w_t_bf16 [in, out], b_2d f32 [1, D]).
    """
    D = w.shape[0]
    assert w.shape == (D, D) and b.shape == (D,)
    w_t = jnp.asarray(w).T.astype(jnp.bfloat16)          # [in, out], 32 KiB at D=128
    b2 = jnp.asarray(b).reshape(1, D).astype(jnp.float32)
    return w_t, b2


def _pick_tm(B):
    # Small batches: one step covering the whole batch, rounded to the 8-row
    # sublane granularity (cheap insurance against masked partial vregs).
    if B <= 256:
        return _round_up(B, 8)
    # Large batches: 256..2048-row tiles, targeting >= 2 grid steps so the
    # "parallel" axis actually shards across both TensorCores on v7x, while
    # staying large enough to amortize per-step pipeline overhead.
    return min(2048, _round_up(pl.cdiv(B, 2), 256))


@functools.partial(jax.jit, static_argnames=("tm",))
def res_pose_converter(x, w_t, b2, *, tm=None):
    """out = x + x @ W.T + b, with W supplied pre-transposed as w_t = W.T.

    x:   [B, D] float32
    w_t: [D, D] bfloat16, [in_features, out_features] (from prepare_params)
    b2:  [1, D] float32
    """
    B, D = x.shape
    assert w_t.shape == (D, D) and b2.shape == (1, D)

    if tm is None:
        tm = _pick_tm(B)
    n_tiles = pl.cdiv(B, tm)

    # VMEM budget: double-buffered f32 x + out tiles, resident bf16 weight,
    # bias, plus headroom.  Stated explicitly so the tile ports to v7x's
    # smaller (64 MiB physical / 32 MiB scoped-default) VMEM without surprises.
    vmem_needed = 2 * (2 * tm * D * 4) + 2 * (D * D * 2) + 2 * (D * 4)
    vmem_limit = int(min(max(vmem_needed + (4 << 20), 16 << 20), 32 << 20))

    return pl.pallas_call(
        _res_linear_kernel,
        out_shape=jax.ShapeDtypeStruct((B, D), x.dtype),
        grid_spec=pltpu.PrefetchScalarGridSpec(
            num_scalar_prefetch=0,
            grid=(n_tiles,),
            in_specs=[
                pl.BlockSpec((tm, D), lambda i: (i, 0)),   # x tile
                pl.BlockSpec((D, D), lambda i: (0, 0)),    # full weight (resident)
                pl.BlockSpec((1, D), lambda i: (0, 0)),    # bias row
            ],
            out_specs=pl.BlockSpec((tm, D), lambda i: (i, 0)),
        ),
        compiler_params=pltpu.CompilerParams(
            dimension_semantics=("parallel",),
            vmem_limit_bytes=vmem_limit,
        ),
    )(x, w_t, b2)


if __name__ == "__main__":
    # Small, deterministic setup consistent with the module:
    # data_size = D = 128, batch B = 16.
    B, D = 16, 128

    key = jax.random.PRNGKey(0)
    kx, kw, kb = jax.random.split(key, 3)

    # PyTorch nn.Linear default init: U(-1/sqrt(in_features), 1/sqrt(in_features))
    bound = 1.0 / jnp.sqrt(jnp.float32(D))
    x = jax.random.normal(kx, (B, D), dtype=jnp.float32)
    w = jax.random.uniform(kw, (D, D), dtype=jnp.float32, minval=-bound, maxval=bound)
    b = jax.random.uniform(kb, (D,), dtype=jnp.float32, minval=-bound, maxval=bound)

    # One-time parameter prep (hoisted out of the forward path).
    w_t, b2 = prepare_params(w, b)

    out = res_pose_converter(x, w_t, b2)
    out = jax.block_until_ready(out)

    # Pure-JAX f32 reference; bf16 matmul operands -> relaxed tolerance.
    ref = x + (x @ w.T + b)
    assert out.shape == (B, D)
    assert jnp.allclose(out, ref, atol=2e-2, rtol=2e-2), "mismatch vs reference"

    print("KERNEL_OK")
</pallas_src>

<mosaic_0001>
module attributes {stable_mosaic.version = 11 : i64} {
  func.func @_res_linear_kernel(%arg0: i32, %arg1: memref<16x128xf32, #tpu.memory_space<vmem>>, %arg2: memref<128x128xbf16, #tpu.memory_space<vmem>>, %arg3: memref<1x128xf32, #tpu.memory_space<vmem>>, %arg4: memref<16x128xf32, #tpu.memory_space<vmem>>) attributes {dimension_semantics = [#tpu.dimension_semantics<parallel>], iteration_bounds = array<i64: 1>, scalar_prefetch = 0 : i64, scratch_operands = 0 : i64, tpu.core_type = #tpu.core_type<tc>, window_params = [{transform_indices = @transform_0, window_bounds = array<i64: 16, 128>}, {pipeline_mode = #tpu.pipeline_mode<synchronous>, transform_indices = @transform_1, window_bounds = array<i64: 128, 128>}, {pipeline_mode = #tpu.pipeline_mode<synchronous>, transform_indices = @transform_2, window_bounds = array<i64: 1, 128>}, {transform_indices = @transform_3, window_bounds = array<i64: 16, 128>}]} {
    %c0 = arith.constant 0 : index
    %c0_0 = arith.constant 0 : index
    %0 = vector.load %arg1[%c0, %c0_0] : memref<16x128xf32, #tpu.memory_space<vmem>>, vector<16x128xf32>
    %1 = arith.truncf %0 : vector<16x128xf32> to vector<16x128xbf16>
    %c0_1 = arith.constant 0 : index
    %c0_2 = arith.constant 0 : index
    %2 = vector.load %arg2[%c0_1, %c0_2] : memref<128x128xbf16, #tpu.memory_space<vmem>>, vector<128x128xbf16>
    %cst = arith.constant dense<0.000000e+00> : vector<16x128xf32>
    %3 = tpu.matmul %1, %2, %cst {dimension_numbers = #tpu.dot_dimension_numbers<[1], [0], [0], [1], [0, 0, 1, 1], [], []>} : vector<16x128xbf16>, vector<128x128xbf16>, vector<16x128xf32> -> vector<16x128xf32>
    %4 = arith.addf %0, %3 : vector<16x128xf32>
    %c0_3 = arith.constant 0 : index
    %c0_4 = arith.constant 0 : index
    %5 = vector.load %arg3[%c0_3, %c0_4] : memref<1x128xf32, #tpu.memory_space<vmem>>, vector<1x128xf32>
    %6 = vector.broadcast %5 : vector<1x128xf32> to vector<16x128xf32>
    %7 = arith.addf %4, %6 : vector<16x128xf32>
    %c0_5 = arith.constant 0 : index
    %c0_6 = arith.constant 0 : index
    %8 = vector.load %arg4[%c0_5, %c0_6] : memref<16x128xf32, #tpu.memory_space<vmem>>, vector<16x128xf32>
    tpu.vector_store %arg4[%c0_5, %c0_6], %7 {strides = array<i32>} : memref<16x128xf32, #tpu.memory_space<vmem>>, vector<16x128xf32>,
    return
  }
  func.func @transform_0(%arg0: i32) -> (i32, i32) {
    %c0_i32 = arith.constant 0 : i32
    %c0_i32_0 = arith.constant 0 : i32
    return %arg0, %c0_i32 : i32, i32
  }
  func.func @transform_1(%arg0: i32) -> (i32, i32) {
    %c0_i32 = arith.constant 0 : i32
    %c0_i32_0 = arith.constant 0 : i32
    %c0_i32_1 = arith.constant 0 : i32
    return %c0_i32, %c0_i32_0 : i32, i32
  }
  func.func @transform_2(%arg0: i32) -> (i32, i32) {
    %c0_i32 = arith.constant 0 : i32
    %c0_i32_0 = arith.constant 0 : i32
    %c0_i32_1 = arith.constant 0 : i32
    return %c0_i32, %c0_i32_0 : i32, i32
  }
  func.func @transform_3(%arg0: i32) -> (i32, i32) {
    %c0_i32 = arith.constant 0 : i32
    %c0_i32_0 = arith.constant 0 : i32
    return %arg0, %c0_i32 : i32, i32
  }
}

</mosaic_0001>

<llo_original>
// kernel: res_pose_converter.1
$region0: #{res_pose_converter.1}
  #allocation0 [shape = 'u32[]', space=smem, size = 0x4, offset = 0x4, fixed_abs, tag = 'smem constant byte address 0x4 - core index']
  #allocation1 [shape = 'u32[144,128]{1,0:T(1,128)}', space=vmem, size = 0x12000, scoped, tag = 'internal scratch']
  %s0 = inlined_call_operand.hbm [shape: f32[16,128], index: 0, kind: input, shape index: {}]
  %s1 = inlined_call_operand.hbm [shape: bf16[128,128], index: 1, kind: input, shape index: {}]
  %s2 = inlined_call_operand.vmem [shape: f32[1,128], index: 2, kind: input, shape index: {}]
  %s3 = inlined_call_operand.hbm [shape: f32[16,128], index: 3, kind: output, shape index: {}]
  %s4 = sld [smem:[#allocation0]]
  $region30: #{res_pose_converter.1} parent=0
    _
  %s6 = ssub.s32 1, %s4
  %s7 = scalar_select 0, %s6, %s4
  $region1: #{res_pose_converter.1} parent=0
    #allocation2 [shape = 'u8[8192]{0}', space=vmem, size = 0x2000, scoped, tag = 'input window, operand 0, single buffered']
    #allocation3 [shape = 's32[1]{0}', space=sflag, size = 0x4, scoped, tag = 'scoped memory for res_pose_converter.1']
    #allocation4 [shape = 's32[1]{0}', space=sflag, size = 0x4, scoped, tag = 'scoped memory for res_pose_converter.1']
    #allocation5 [shape = 'u8[32768]{0}', space=vmem, size = 0x8000, scoped, tag = 'input window, operand 1, single buffered']
    #allocation6 [shape = 's32[1]{0}', space=sflag, size = 0x4, scoped, tag = 'scoped memory for res_pose_converter.1']
    #allocation7 [shape = 'u8[8192]{0}', space=vmem, size = 0x2000, scoped, tag = 'output window, operand 0, single buffered']
    %8 = vsyncpa [#allocation3], 0
    %9 = vsyncpa [#allocation6], 0
    %10 = vsyncpa [#allocation4], 0
    // Predicated region
    $region2: #{res_pose_converter.1} parent=1 // pred_check
      _
    $region3: #{res_pose_converter.1} parent=1 // pred_check_branch
      %12 = sbr.rel (0) target = $region5
    $region4: #{res_pose_converter.1} parent=1 // pred_region
      %s14 = ssub.s32 256, 256
      %15 = vsyncadd [#allocation3], %s14
      %s16 = sshll.u32 [#allocation2], 4
      %s17 = int_to_ptr.vmem [resolvable:$true] %s16
      %22 = dma.hbm_to_vmem [thread:$0]  %s0, 256, %s17, [#allocation3], 128, 128, 8
    $region5: #{res_pose_converter.1} parent=1 // pred_fallthru
      _
    // Predicated region
    $region6: #{res_pose_converter.1} parent=1 // pred_check
      _
    $region7: #{res_pose_converter.1} parent=1 // pred_check_branch
      %24 = sbr.rel (0) target = $region9
    $region8: #{res_pose_converter.1} parent=1 // pred_region
      %s26 = ssub.s32 1024, 1024
      %27 = vsyncadd [#allocation6], %s26
      %s28 = sshll.u32 [#allocation5], 4
      %s29 = int_to_ptr.vmem [resolvable:$true] %s28
      %34 = dma.hbm_to_vmem [thread:$0]  %s1, 1024, %s29, [#allocation6], 64, 64, 4
    $region9: #{res_pose_converter.1} parent=1 // pred_fallthru
      _
    // Predicated region
    $region10: #{res_pose_converter.1} parent=1 // pred_check
      _
    $region11: #{res_pose_converter.1} parent=1 // pred_check_branch
      %36 = sbr.rel (0) target = $region13
    $region12: #{res_pose_converter.1} parent=1 // pred_region
      _
    $region13: #{res_pose_converter.1} parent=1 // pred_fallthru
      _
    // Predicated region
    $region14: #{res_pose_converter.1} parent=1 // pred_check
      _
    $region15: #{res_pose_converter.1} parent=1 // pred_check_branch
      %38 = sbr.rel (0) target = $region17
    $region16: #{res_pose_converter.1} parent=1 // pred_region
      %39 = dma.done [#allocation3], 256
    $region17: #{res_pose_converter.1} parent=1 // pred_fallthru
      _
    // Predicated region
    $region18: #{res_pose_converter.1} parent=1 // pred_check
      _
    $region19: #{res_pose_converter.1} parent=1 // pred_check_branch
      %41 = sbr.rel (0) target = $region21
    $region20: #{res_pose_converter.1} parent=1 // pred_region
      %42 = dma.done [#allocation6], 1024
    $region21: #{res_pose_converter.1} parent=1 // pred_fallthru
      _
    %v44 = vld [vmem:[#allocation2] sm:$0xff]
    %v45 = vld [vmem:[#allocation2 + $0x8] sm:$0xff]
    %v46 = vpack.c.bf16 %v45, %v44
    %v47 = vld [vmem:[#allocation5] sm:$0xf]
    %v48 = vld [vmem:[#allocation5 + $0x4] sm:$0xf]
    %v49 = vld [vmem:[#allocation5 + $0x8] sm:$0xf]
    %v50 = vld [vmem:[#allocation5 + $0xc] sm:$0xf]
    %v51 = vld [vmem:[#allocation5 + $0x10] sm:$0xf]
    %v52 = vld [vmem:[#allocation5 + $0x14] sm:$0xf]
    %v53 = vld [vmem:[#allocation5 + $0x18] sm:$0xf]
    %v54 = vld [vmem:[#allocation5 + $0x1c] sm:$0xf]
    %v55 = vld [vmem:[#allocation5 + $0x20] sm:$0xf]
    %v56 = vld [vmem:[#allocation5 + $0x24] sm:$0xf]
    %v57 = vld [vmem:[#allocation5 + $0x28] sm:$0xf]
    %v58 = vld [vmem:[#allocation5 + $0x2c] sm:$0xf]
    %v59 = vld [vmem:[#allocation5 + $0x30] sm:$0xf]
    %v60 = vld [vmem:[#allocation5 + $0x34] sm:$0xf]
    %v61 = vld [vmem:[#allocation5 + $0x38] sm:$0xf]
    %v62 = vld [vmem:[#allocation5 + $0x3c] sm:$0xf]
    %v79 = vunpack.c.l.b16 %v47
    %v80 = vunpack.c.l.b16 %v48
    %v81 = vunpack.c.l.b16 %v49
    %v82 = vunpack.c.l.b16 %v50
    %v83 = vunpack.c.l.b16 %v51
    %v84 = vunpack.c.l.b16 %v52
    %v85 = vunpack.c.l.b16 %v53
    %v86 = vunpack.c.l.b16 %v54
    %v87 = vunpack.c.l.b16 %v55
    %v88 = vunpack.c.l.b16 %v56
    %v89 = vunpack.c.l.b16 %v57
    %v90 = vunpack.c.l.b16 %v58
    %v91 = vunpack.c.l.b16 %v59
    %v92 = vunpack.c.l.b16 %v60
    %v93 = vunpack.c.l.b16 %v61
    %v94 = vunpack.c.l.b16 %v62
    %v95 = vpack.c.b16 %v80, %v79
    %v96 = vpack.c.b16 %v82, %v81
    %v97 = vpack.c.b16 %v84, %v83
    %v98 = vpack.c.b16 %v86, %v85
    %v99 = vpack.c.b16 %v88, %v87
    %v100 = vpack.c.b16 %v90, %v89
    %v101 = vpack.c.b16 %v92, %v91
    %v102 = vpack.c.b16 %v94, %v93
    %111 = vmatprep.subr.bf16.mxu0 0
    %112 = vmatpush1.bf16.msra.mxu0 %v102
    %113 = vmatprep.subr.bf16.mxu0 0
    %114 = vmatpush1.bf16.msra.mxu0 %v101
    %115 = vmatprep.subr.bf16.mxu0 0
    %116 = vmatpush1.bf16.msra.mxu0 %v100
    %117 = vmatprep.subr.bf16.mxu0 0
    %118 = vmatpush1.bf16.msra.mxu0 %v99
    %119 = vmatprep.subr.bf16.mxu0 0
    %120 = vmatpush1.bf16.msra.mxu0 %v98
    %121 = vmatprep.subr.bf16.mxu0 0
    %122 = vmatpush1.bf16.msra.mxu0 %v97
    %123 = vmatprep.subr.bf16.mxu0 0
    %124 = vmatpush1.bf16.msra.mxu0 %v96
    %125 = vmatprep.subr.bf16.mxu0 0
    %126 = vmatpush1.bf16.msra.mxu0 %v95
    %127 = vmatprep.subr.bf16.mxu0 0
    %128 = vmatpush2.bf16.msra.mxu0 0
    %129 = vmatprep.subr.bf16.mxu0 0
    %130 = vmatpush2.bf16.msra.mxu0 0
    %131 = vmatprep.subr.bf16.mxu0 0
    %132 = vmatpush2.bf16.msra.mxu0 0
    %133 = vmatprep.subr.bf16.mxu0 0
    %134 = vmatpush2.bf16.msra.mxu0 0
    %135 = vmatprep.subr.bf16.mxu0 0
    %136 = vmatpush2.bf16.msra.mxu0 0
    %137 = vmatprep.subr.bf16.mxu0 0
    %138 = vmatpush2.bf16.msra.mxu0 0
    %139 = vmatprep.subr.bf16.mxu0 0
    %140 = vmatpush2.bf16.msra.mxu0 0
    %141 = vmatprep.subr.bf16.mxu0 0
    %142 = vmatpush2.bf16.msra.mxu0 0
    %143 = vmatprep.mubr.bf16.mxu0 0
    %144 = vmatmul.mubr.bf16.gmra.mxu0 %v46
    %v145 = vpop.f32.mrf.mxu0
    %v146 = vadd.f32 0.0, %v145
    %v147 = vpop.f32.mrf.mxu0
    %v148 = vpop.f32.mrf.mxu0
    %v149 = vadd.f32 0.0, %v148
    %v150 = vpop.f32.mrf.mxu0
    %151 = vdwg.mxu0
    %v152 = vadd.f32 %v44, %v146
    %v153 = vadd.f32 %v45, %v149
    %v154 = vld [vmem:[%s2] sm:$0x1]
    %v156 = vlaneseq
    %v157 = vshrl.u32 %v156, 7
    %v158 = vsub.s32 0, %v157
    %v159 = vrot.slane %v154, %v158
    %v161 = vadd.f32 %v152, %v159
    %v162 = vadd.f32 %v153, %v159
    %163 = vst [vmem:[#allocation7] sm:$0xff] %v161
    %164 = vst [vmem:[#allocation7 + $0x8] sm:$0xff] %v162
    // Predicated region
    $region22: #{res_pose_converter.1} parent=1 // pred_check
      _
    $region23: #{res_pose_converter.1} parent=1 // pred_check_branch
      %166 = sbr.rel (0) target = $region25
    $region24: #{res_pose_converter.1} parent=1 // pred_region
      %s168 = ssub.s32 256, 256
      %169 = vsyncadd [#allocation4], %s168
      %s170 = sshll.u32 [#allocation7], 4
      %s171 = int_to_ptr.vmem [resolvable:$true] %s170
      %176 = dma.vmem_to_hbm [thread:$0]  %s171, 256, %s3, [#allocation4], 128, 128, 8
    $region25: #{res_pose_converter.1} parent=1 // pred_fallthru
      _
    // Predicated region
    $region26: #{res_pose_converter.1} parent=1 // pred_check
      _
    $region27: #{res_pose_converter.1} parent=1 // pred_check_branch
      %178 = sbr.rel (0) target = $region29
    $region28: #{res_pose_converter.1} parent=1 // pred_region
      %179 = dma.done [#allocation4], 256
    $region29: #{res_pose_converter.1} parent=1 // pred_fallthru
      _
    %180 = vsyncpa [#allocation3], 1
    %181 = vsyncpa [#allocation6], 1
    %182 = vsyncpa [#allocation4], 1

</llo_original>
